<compile_context>
chip_gen: v7x
topology: tpu7x:2x2x1
jax: 0.10.0
libtpu: 0.0.40
codegen_flags: <defaults>
</compile_context>

<pallas_src>
import numpy as np
import jax
import jax.numpy as jnp
from jax import lax
from jax.experimental import pallas as pl
from jax.experimental.pallas import tpu as pltpu


# --------------------------------------------------------------------------
# Trace-time hardware queries (best effort, with safe fallbacks)
# --------------------------------------------------------------------------
def _tpu_generation():
    """Best-effort TPU generation (4/5/6/7) from the device kind string."""
    try:
        kind = jax.devices()[0].device_kind.lower()
    except Exception:
        return 6
    for g in (7, 6, 5, 4):
        if f"v{g}" in kind or f"tpu{g}" in kind:
            return g
    return 6


def _vmem_capacity_bytes():
    try:
        cap = int(pltpu.get_tpu_info().vmem_capacity_bytes)
    except Exception:
        cap = 64 << 20  # conservative (v7x physical per-TC VMEM)
    return max(cap, 32 << 20)


# --------------------------------------------------------------------------
# Lookup kernel: batched gather of TM tokens per grid step.
#   out[t, :] = proj_table[idx[t], :]   realized as one-hot matmul(s) so it
#   lowers cleanly on the MXU and keeps the table VMEM-resident.
#
#   idx_ref  : (rows, k) int32   -- k tokens packed per output row (k*D lanes)
#   tab refs : 1 table (f32) or a bf16 hi/lo pair (v5e path), each (Vpad, D)
#   out_ref  : (rows, k*D)
# --------------------------------------------------------------------------
def _lookup_kernel(idx_ref, *refs):
    *tab_refs, out_ref = refs
    rows, k = idx_ref.shape
    vpad, d = tab_refs[0].shape

    # 2-D iota (TPU requirement); small (rows, Vpad) block, cheap to regenerate.
    col = lax.broadcasted_iota(jnp.int32, (rows, vpad), 1)

    parts = []
    for j in range(k):  # static unroll; k = 128 // D (or 1)
        onehot = idx_ref[:, j:j + 1] == col          # exact 0/1 mask
        acc = jnp.dot(onehot.astype(tab_refs[0].dtype), tab_refs[0][...],
                      preferred_element_type=jnp.float32)
        for tab in tab_refs[1:]:                     # bf16 lo half (v5e path)
            acc = acc + jnp.dot(onehot.astype(tab.dtype), tab[...],
                                preferred_element_type=jnp.float32)
        parts.append(acc)

    out = parts[0] if k == 1 else jnp.concatenate(parts, axis=-1)
    out_ref[...] = out.astype(out_ref.dtype)


# --------------------------------------------------------------------------
# Wrapper
# --------------------------------------------------------------------------
def embedder_forward(src, cbfv_table, weight, bias, *, tm=None,
                     out_dtype=jnp.float32):
    """Forward pass of Embedder.

    src        : (B, T) int32 element indices (0 == padding row of zeros)
    cbfv_table : (V+1, F) f32  embedding table (row 0 = zeros)
    weight     : (d_model, F)  f32  nn.Linear weight
    bias       : (d_model,)    f32  nn.Linear bias
    out_dtype  : output dtype; pass jnp.bfloat16 if downstream runs bf16
                 (halves the store-bound kernel time on v6e/v7x).
    returns    : (B, T, d_model) out_dtype
    """
    B, T = src.shape
    Vp1, F = cbfv_table.shape
    D = int(weight.shape[0])
    gen = _tpu_generation()

    # ---- Fold the Linear into the table once (plain XLA, one tiny matmul). ----
    # Vocab axis padded to a multiple of 128 so the one-hot contraction and the
    # resident-table block are MXU/tile friendly; padded rows are never indexed.
    Vpad = ((Vp1 + 127) // 128) * 128
    tab_pad = jnp.zeros((Vpad, F), jnp.float32).at[:Vp1].set(
        cbfv_table.astype(jnp.float32))
    proj_table = tab_pad @ weight.T.astype(jnp.float32) \
        + bias.astype(jnp.float32)[None, :]                       # (Vpad, D) f32

    # v5e: f32 MXU matmuls are multi-pass emulated and would become the binding
    # unit; split the folded table into bf16 hi/lo halves and accumulate two
    # native bf16 matmuls in f32 (near-f32 accuracy).  v6e/v7x keep exact f32
    # (the f32 dot hides under the output writeback there).
    if gen <= 5:
        hi = proj_table.astype(jnp.bfloat16)
        lo = (proj_table - hi.astype(jnp.float32)).astype(jnp.bfloat16)
        tables = (hi, lo)
    else:
        tables = (proj_table,)
    tab_bytes = sum(np.dtype(t.dtype).itemsize for t in tables) * Vpad * D

    # ---- Lane-dense output packing: with D < 128, pack k = 128 // D tokens per
    #      output row so the stores are full-width vst (not masked vst.msk). ----
    k = 128 // D if (D < 128 and 128 % D == 0) else 1

    # ---- Token tile heuristic (generation aware). ----
    N = B * T
    tm_unit = 8 * k                      # keeps the packed sublane dim a multiple of 8
    if tm is None:
        cap = {5: 1024, 6: 2048}.get(gen, 4096)   # v7x / newer: 4096
        tm = cap
        if gen >= 7:
            # leave >= 2 blocks so the two TensorCores can split the token axis
            tm = min(tm, tm_unit * max(1, pl.cdiv(N, 2 * tm_unit)))
        tm = min(tm, tm_unit * pl.cdiv(N, tm_unit))   # never larger than needed
    tm = max(tm_unit, (int(tm) // tm_unit) * tm_unit)

    # ---- VMEM guard: resident table(s) + double-buffered idx/out blocks. ----
    vmem_cap = _vmem_capacity_bytes()
    budget = min(vmem_cap // 2, 48 << 20)
    out_itemsize = np.dtype(out_dtype).itemsize

    def footprint(t_tokens):
        return (2 * tab_bytes                          # table double-buffered by the pipeline
                + 2 * t_tokens * D * out_itemsize      # out blocks
                + 2 * t_tokens * 4)                    # idx blocks

    while footprint(tm) > budget and tm > tm_unit:
        tm = max(tm_unit, (tm // 2 // tm_unit) * tm_unit)
    if 2 * tab_bytes > budget:
        # TODO(synk): if vocab * d_model ever grows past VMEM, add a vocab
        # ("arbitrary") grid axis with an f32 accumulator, or switch to a
        # scalar-prefetch DMA row gather instead of the resident table.
        raise ValueError("projected embedding table does not fit in VMEM")

    n_blocks = pl.cdiv(N, tm)
    N_pad = n_blocks * tm
    rows_per_block = tm // k
    R = N_pad // k

    # Pad token indices with 0 (the all-zeros padding row); padded rows are
    # sliced off below.  Note: out-of-range indices produce all-zero rows
    # (one-hot matches nothing) rather than clipping like jnp.take.
    idx = jnp.zeros((N_pad,), jnp.int32).at[:N].set(
        src.reshape(-1).astype(jnp.int32)).reshape(R, k)

    in_specs = [pl.BlockSpec((rows_per_block, k), lambda i: (i, 0))]
    # Resident table(s): constant index_map, so the pipeline never re-copies
    # them.  (Single-buffering via pl.Buffered(1) would also drop the second
    # copy, but at <= 0.5 MiB the headroom is not needed here.)
    in_specs += [pl.BlockSpec((Vpad, D), lambda i: (0, 0)) for _ in tables]

    out_flat = pl.pallas_call(
        _lookup_kernel,
        out_shape=jax.ShapeDtypeStruct((R, k * D), out_dtype),
        grid_spec=pltpu.PrefetchScalarGridSpec(
            num_scalar_prefetch=0,
            grid=(n_blocks,),
            in_specs=in_specs,
            out_specs=pl.BlockSpec((rows_per_block, k * D), lambda i: (i, 0)),
        ),
        compiler_params=pltpu.CompilerParams(
            # "parallel" = portable megacore hint: shards the token axis across
            # TensorCores on multi-TC chips (v7x), no-op on single-TC v5e/v6e.
            # tm is capped above so n_blocks >= 2 whenever N is large enough
            # for that split to matter.
            dimension_semantics=("parallel",),
            vmem_limit_bytes=int(min(vmem_cap - (8 << 20),
                                     max(32 << 20, footprint(tm) + (4 << 20)))),
        ),
    )(idx, *tables)

    # (R, k*D) row-major == (N_pad, D): row r holds tokens r*k .. r*k+k-1.
    return out_flat.reshape(N_pad, D)[:N].reshape(B, T, D)


if __name__ == "__main__":
    # ---- deterministic synthetic parameters ----
    # TODO(synk): the original module loads mat2vec.csv via pandas; replaced by
    # an in-script random table of the same structure (row 0 = zeros padding).
    key = jax.random.PRNGKey(0)
    k_tab, k_w, k_b, k_src = jax.random.split(key, 4)

    d_model = 32          # small d_model
    feat_size = 32        # synthetic mat2vec feature size
    n_elements = 16       # synthetic number of elements
    B, T = 2, 8           # batch, sequence length

    cbfv = jax.random.normal(k_tab, (n_elements, feat_size), dtype=jnp.float32)
    cat_array = jnp.concatenate(
        [jnp.zeros((1, feat_size), dtype=jnp.float32), cbfv], axis=0
    )  # (n_elements + 1, feat_size), row 0 is the padding row

    bound = 1.0 / np.sqrt(feat_size)
    weight = jax.random.uniform(
        k_w, (d_model, feat_size), minval=-bound, maxval=bound, dtype=jnp.float32)
    bias = jax.random.uniform(
        k_b, (d_model,), minval=-bound, maxval=bound, dtype=jnp.float32)

    src = jax.random.randint(
        k_src, (B, T), minval=0, maxval=n_elements + 1, dtype=jnp.int32)

    # ---- run (jit so the XLA-side table fold fuses with the pad + bias) ----
    out = jax.jit(embedder_forward)(src, cat_array, weight, bias)
    out = jax.block_until_ready(out)

    # ---- pure-JAX reference check ----
    ref = jnp.take(cat_array, src, axis=0) @ weight.T + bias
    # v5e path uses a bf16 hi/lo table split (~2^-16 relative error); f32 path is exact.
    tol = 1e-5 if _tpu_generation() >= 6 else 2e-4
    np.testing.assert_allclose(np.asarray(out), np.asarray(ref), rtol=tol, atol=tol)
    assert out.shape == (B, T, d_model) and out.dtype == jnp.float32

    print("KERNEL_OK")
</pallas_src>

<mosaic_0001>
module attributes {stable_mosaic.version = 11 : i64} {
  func.func @_lookup_kernel(%arg0: i32, %arg1: memref<8x4xi32, #tpu.memory_space<vmem>>, %arg2: memref<128x32xf32, #tpu.memory_space<vmem>>, %arg3: memref<8x128xf32, #tpu.memory_space<vmem>>) attributes {dimension_semantics = [#tpu.dimension_semantics<parallel>], iteration_bounds = array<i64: 1>, scalar_prefetch = 0 : i64, scratch_operands = 0 : i64, tpu.core_type = #tpu.core_type<tc>, window_params = [{transform_indices = @transform_0, window_bounds = array<i64: 8, 4>}, {pipeline_mode = #tpu.pipeline_mode<synchronous>, transform_indices = @transform_1, window_bounds = array<i64: 128, 32>}, {transform_indices = @transform_2, window_bounds = array<i64: 8, 128>}]} {
    %0 = tpu.iota {dimensions = array<i32: 1>} : vector<8x128xi32>
    %c0 = arith.constant 0 : index
    %c0_0 = arith.constant 0 : index
    %1 = vector.load %arg1[%c0, %c0_0] : memref<8x4xi32, #tpu.memory_space<vmem>>, vector<8x1xi32>
    %2 = vector.broadcast %1 : vector<8x1xi32> to vector<8x128xi32>
    %3 = arith.cmpi eq, %2, %0 : vector<8x128xi32>
    %4 = arith.extui %3 : vector<8x128xi1> to vector<8x128xi32>
    %5 = arith.sitofp %4 : vector<8x128xi32> to vector<8x128xf32>
    %c0_1 = arith.constant 0 : index
    %c0_2 = arith.constant 0 : index
    %6 = vector.load %arg2[%c0_1, %c0_2] : memref<128x32xf32, #tpu.memory_space<vmem>>, vector<128x32xf32>
    %cst = arith.constant dense<0.000000e+00> : vector<8x32xf32>
    %7 = tpu.matmul %5, %6, %cst {dimension_numbers = #tpu.dot_dimension_numbers<[1], [0], [0], [1], [0, 0, 1, 1], [], []>} : vector<8x128xf32>, vector<128x32xf32>, vector<8x32xf32> -> vector<8x32xf32>
    %c0_3 = arith.constant 0 : index
    %c1 = arith.constant 1 : index
    %8 = vector.load %arg1[%c0_3, %c1] : memref<8x4xi32, #tpu.memory_space<vmem>>, vector<8x1xi32>
    %9 = vector.broadcast %8 : vector<8x1xi32> to vector<8x128xi32>
    %10 = arith.cmpi eq, %9, %0 : vector<8x128xi32>
    %11 = arith.extui %10 : vector<8x128xi1> to vector<8x128xi32>
    %12 = arith.sitofp %11 : vector<8x128xi32> to vector<8x128xf32>
    %c0_4 = arith.constant 0 : index
    %c0_5 = arith.constant 0 : index
    %13 = vector.load %arg2[%c0_4, %c0_5] : memref<128x32xf32, #tpu.memory_space<vmem>>, vector<128x32xf32>
    %cst_6 = arith.constant dense<0.000000e+00> : vector<8x32xf32>
    %14 = tpu.matmul %12, %13, %cst_6 {dimension_numbers = #tpu.dot_dimension_numbers<[1], [0], [0], [1], [0, 0, 1, 1], [], []>} : vector<8x128xf32>, vector<128x32xf32>, vector<8x32xf32> -> vector<8x32xf32>
    %c0_7 = arith.constant 0 : index
    %c2 = arith.constant 2 : index
    %15 = vector.load %arg1[%c0_7, %c2] : memref<8x4xi32, #tpu.memory_space<vmem>>, vector<8x1xi32>
    %16 = vector.broadcast %15 : vector<8x1xi32> to vector<8x128xi32>
    %17 = arith.cmpi eq, %16, %0 : vector<8x128xi32>
    %18 = arith.extui %17 : vector<8x128xi1> to vector<8x128xi32>
    %19 = arith.sitofp %18 : vector<8x128xi32> to vector<8x128xf32>
    %c0_8 = arith.constant 0 : index
    %c0_9 = arith.constant 0 : index
    %20 = vector.load %arg2[%c0_8, %c0_9] : memref<128x32xf32, #tpu.memory_space<vmem>>, vector<128x32xf32>
    %cst_10 = arith.constant dense<0.000000e+00> : vector<8x32xf32>
    %21 = tpu.matmul %19, %20, %cst_10 {dimension_numbers = #tpu.dot_dimension_numbers<[1], [0], [0], [1], [0, 0, 1, 1], [], []>} : vector<8x128xf32>, vector<128x32xf32>, vector<8x32xf32> -> vector<8x32xf32>
    %c0_11 = arith.constant 0 : index
    %c3 = arith.constant 3 : index
    %22 = vector.load %arg1[%c0_11, %c3] : memref<8x4xi32, #tpu.memory_space<vmem>>, vector<8x1xi32>
    %23 = vector.broadcast %22 : vector<8x1xi32> to vector<8x128xi32>
    %24 = arith.cmpi eq, %23, %0 : vector<8x128xi32>
    %25 = arith.extui %24 : vector<8x128xi1> to vector<8x128xi32>
    %26 = arith.sitofp %25 : vector<8x128xi32> to vector<8x128xf32>
    %c0_12 = arith.constant 0 : index
    %c0_13 = arith.constant 0 : index
    %27 = vector.load %arg2[%c0_12, %c0_13] : memref<128x32xf32, #tpu.memory_space<vmem>>, vector<128x32xf32>
    %cst_14 = arith.constant dense<0.000000e+00> : vector<8x32xf32>
    %28 = tpu.matmul %26, %27, %cst_14 {dimension_numbers = #tpu.dot_dimension_numbers<[1], [0], [0], [1], [0, 0, 1, 1], [], []>} : vector<8x128xf32>, vector<128x32xf32>, vector<8x32xf32> -> vector<8x32xf32>
    %29 = tpu.concatenate %7, %14, %21, %28 in 1 : vector<8x32xf32>, vector<8x32xf32>, vector<8x32xf32>, vector<8x32xf32> -> vector<8x128xf32>
    %c0_15 = arith.constant 0 : index
    %c0_16 = arith.constant 0 : index
    %30 = vector.load %arg3[%c0_15, %c0_16] : memref<8x128xf32, #tpu.memory_space<vmem>>, vector<8x128xf32>
    tpu.vector_store %arg3[%c0_15, %c0_16], %29 {strides = array<i32>} : memref<8x128xf32, #tpu.memory_space<vmem>>, vector<8x128xf32>,
    return
  }
  func.func @transform_0(%arg0: i32) -> (i32, i32) {
    %c0_i32 = arith.constant 0 : i32
    %c0_i32_0 = arith.constant 0 : i32
    return %arg0, %c0_i32 : i32, i32
  }
  func.func @transform_1(%arg0: i32) -> (i32, i32) {
    %c0_i32 = arith.constant 0 : i32
    %c0_i32_0 = arith.constant 0 : i32
    %c0_i32_1 = arith.constant 0 : i32
    return %c0_i32, %c0_i32_0 : i32, i32
  }
  func.func @transform_2(%arg0: i32) -> (i32, i32) {
    %c0_i32 = arith.constant 0 : i32
    %c0_i32_0 = arith.constant 0 : i32
    return %arg0, %c0_i32 : i32, i32
  }
}

</mosaic_0001>

<llo_original>
// kernel: embedder_forward.1
$region0: #{embedder_forward.1}
  #allocation0 [shape = 'u32[]', space=smem, size = 0x4, offset = 0x4, fixed_abs, tag = 'smem constant byte address 0x4 - core index']
  #allocation1 [shape = 'u32[144,128]{1,0:T(1,128)}', space=vmem, size = 0x12000, scoped, tag = 'internal scratch']
  %s0 = inlined_call_operand.vmem [shape: s32[8,4], index: 0, kind: input, shape index: {}]
  %s1 = inlined_call_operand.vmem [shape: f32[128,32], index: 1, kind: input, shape index: {}]
  %s2 = inlined_call_operand.vmem [shape: f32[8,128], index: 2, kind: output, shape index: {}]
  %s3 = sld [smem:[#allocation0]]
  $region18: #{embedder_forward.1} parent=0
    _
  %s5 = ssub.s32 1, %s3
  %s6 = scalar_select 0, %s5, %s3
  // Predicated region
  $region2: #{embedder_forward.1} parent=0 // pred_check
    _
  $region3: #{embedder_forward.1} parent=0 // pred_check_branch
    %8 = sbr.rel (0) target = $region5
  $region4: #{embedder_forward.1} parent=0 // pred_region
    _
  $region5: #{embedder_forward.1} parent=0 // pred_fallthru
    _
  // Predicated region
  $region6: #{embedder_forward.1} parent=0 // pred_check
    _
  $region7: #{embedder_forward.1} parent=0 // pred_check_branch
    %10 = sbr.rel (0) target = $region9
  $region8: #{embedder_forward.1} parent=0 // pred_region
    _
  $region9: #{embedder_forward.1} parent=0 // pred_fallthru
    _
  %v11 = vlaneseq
  %v12 = vand.u32 %v11, 127
  %v13 = vld [vmem:[%s0] sm:$0xff]
  %14 = vset.pattern.permute.xlu0 0
  %15 = vperm.xlu0 %14, %v13
  %v16 = vpop.permute.xlu0 %15
  %vm17 = vcmp.eq.s32.totalorder %v16, %v12
  %v18 = vsel %vm17, 1, 0
  %v19 = vcvt.s32.f32 %v18
  %v20 = vld [vmem:[%s1] sm:$0xff]
  %v21 = vld [vmem:[%s1 + $0x8] sm:$0xff]
  %v22 = vld [vmem:[%s1 + $0x10] sm:$0xff]
  %v23 = vld [vmem:[%s1 + $0x18] sm:$0xff]
  %v24 = vld [vmem:[%s1 + $0x20] sm:$0xff]
  %v25 = vld [vmem:[%s1 + $0x28] sm:$0xff]
  %v26 = vld [vmem:[%s1 + $0x30] sm:$0xff]
  %v27 = vld [vmem:[%s1 + $0x38] sm:$0xff]
  %v28 = vld [vmem:[%s1 + $0x40] sm:$0xff]
  %v29 = vld [vmem:[%s1 + $0x48] sm:$0xff]
  %v30 = vld [vmem:[%s1 + $0x50] sm:$0xff]
  %v31 = vld [vmem:[%s1 + $0x58] sm:$0xff]
  %v32 = vld [vmem:[%s1 + $0x60] sm:$0xff]
  %v33 = vld [vmem:[%s1 + $0x68] sm:$0xff]
  %v34 = vld [vmem:[%s1 + $0x70] sm:$0xff]
  %v35 = vld [vmem:[%s1 + $0x78] sm:$0xff]
  %36 = vmatprep.subr.mxu0 0.0
  %37 = vmatpush1.msra.mxu0 %v20
  %38 = vmatprep.subr.mxu0 0.0
  %39 = vmatpush1.msra.mxu0 %v21
  %40 = vmatprep.subr.mxu0 0.0
  %41 = vmatpush1.msra.mxu0 %v22
  %42 = vmatprep.subr.mxu0 0.0
  %43 = vmatpush1.msra.mxu0 %v23
  %44 = vmatprep.subr.mxu0 0.0
  %45 = vmatpush1.msra.mxu0 %v24
  %46 = vmatprep.subr.mxu0 0.0
  %47 = vmatpush1.msra.mxu0 %v25
  %48 = vmatprep.subr.mxu0 0.0
  %49 = vmatpush1.msra.mxu0 %v26
  %50 = vmatprep.subr.mxu0 0.0
  %51 = vmatpush1.msra.mxu0 %v27
  %52 = vmatprep.subr.mxu0 0.0
  %53 = vmatpush1.msra.mxu0 %v28
  %54 = vmatprep.subr.mxu0 0.0
  %55 = vmatpush1.msra.mxu0 %v29
  %56 = vmatprep.subr.mxu0 0.0
  %57 = vmatpush1.msra.mxu0 %v30
  %58 = vmatprep.subr.mxu0 0.0
  %59 = vmatpush1.msra.mxu0 %v31
  %60 = vmatprep.subr.mxu0 0.0
  %61 = vmatpush1.msra.mxu0 %v32
  %62 = vmatprep.subr.mxu0 0.0
  %63 = vmatpush1.msra.mxu0 %v33
  %64 = vmatprep.subr.mxu0 0.0
  %65 = vmatpush1.msra.mxu0 %v34
  %66 = vmatprep.subr.mxu0 0.0
  %67 = vmatpush1.msra.mxu0 %v35
  %68 = vmatprep.subr.mxu0 0.0
  %69 = vmatpush1.msra.mxu0 0.0
  %70 = vmatprep.subr.mxu0 0.0
  %71 = vmatpush1.msra.mxu0 0.0
  %72 = vmatprep.subr.mxu0 0.0
  %73 = vmatpush1.msra.mxu0 0.0
  %74 = vmatprep.subr.mxu0 0.0
  %75 = vmatpush1.msra.mxu0 0.0
  %76 = vmatprep.subr.mxu0 0.0
  %77 = vmatpush1.msra.mxu0 0.0
  %78 = vmatprep.subr.mxu0 0.0
  %79 = vmatpush1.msra.mxu0 0.0
  %80 = vmatprep.subr.mxu0 0.0
  %81 = vmatpush1.msra.mxu0 0.0
  %82 = vmatprep.subr.mxu0 0.0
  %83 = vmatpush1.msra.mxu0 0.0
  %84 = vmatprep.subr.mxu0 0.0
  %85 = vmatpush1.msra.mxu0 0.0
  %86 = vmatprep.subr.mxu0 0.0
  %87 = vmatpush1.msra.mxu0 0.0
  %88 = vmatprep.subr.mxu0 0.0
  %89 = vmatpush1.msra.mxu0 0.0
  %90 = vmatprep.subr.mxu0 0.0
  %91 = vmatpush1.msra.mxu0 0.0
  %92 = vmatprep.subr.mxu0 0.0
  %93 = vmatpush1.msra.mxu0 0.0
  %94 = vmatprep.subr.mxu0 0.0
  %95 = vmatpush1.msra.mxu0 0.0
  %96 = vmatprep.subr.mxu0 0.0
  %97 = vmatpush1.msra.mxu0 0.0
  %98 = vmatprep.subr.mxu0 0.0
  %99 = vmatpush1.msra.mxu0 0.0
  %100 = vmatprep.mubr.f32.mxu0 0.0
  %101 = vmatmul.mubr.f32.gmra.mrb[0].mxu0 %v19
  %v102 = vpop.f32.mrb[0].mxu0
  %v103 = vadd.f32 0.0, %v102
  %v104 = vpop.f32.mrb[0].mxu0
  %105 = vdwg.mxu0
  %106 = vset.pattern.permute.xlu0 1
  %107 = vperm.xlu0 %106, %v13
  %v108 = vpop.permute.xlu0 %107
  %vm109 = vcmp.eq.s32.totalorder %v108, %v12
  %v110 = vsel %vm109, 1, 0
  %v111 = vcvt.s32.f32 %v110
  %112 = vmatprep.subr.mxu0 0.0
  %113 = vmatpush1.msra.mxu0 %v20
  %114 = vmatprep.subr.mxu0 0.0
  %115 = vmatpush1.msra.mxu0 %v21
  %116 = vmatprep.subr.mxu0 0.0
  %117 = vmatpush1.msra.mxu0 %v22
  %118 = vmatprep.subr.mxu0 0.0
  %119 = vmatpush1.msra.mxu0 %v23
  %120 = vmatprep.subr.mxu0 0.0
  %121 = vmatpush1.msra.mxu0 %v24
  %122 = vmatprep.subr.mxu0 0.0
  %123 = vmatpush1.msra.mxu0 %v25
  %124 = vmatprep.subr.mxu0 0.0
  %125 = vmatpush1.msra.mxu0 %v26
  %126 = vmatprep.subr.mxu0 0.0
  %127 = vmatpush1.msra.mxu0 %v27
  %128 = vmatprep.subr.mxu0 0.0
  %129 = vmatpush1.msra.mxu0 %v28
  %130 = vmatprep.subr.mxu0 0.0
  %131 = vmatpush1.msra.mxu0 %v29
  %132 = vmatprep.subr.mxu0 0.0
  %133 = vmatpush1.msra.mxu0 %v30
  %134 = vmatprep.subr.mxu0 0.0
  %135 = vmatpush1.msra.mxu0 %v31
  %136 = vmatprep.subr.mxu0 0.0
  %137 = vmatpush1.msra.mxu0 %v32
  %138 = vmatprep.subr.mxu0 0.0
  %139 = vmatpush1.msra.mxu0 %v33
  %140 = vmatprep.subr.mxu0 0.0
  %141 = vmatpush1.msra.mxu0 %v34
  %142 = vmatprep.subr.mxu0 0.0
  %143 = vmatpush1.msra.mxu0 %v35
  %144 = vmatprep.subr.mxu0 0.0
  %145 = vmatpush1.msra.mxu0 0.0
  %146 = vmatprep.subr.mxu0 0.0
  %147 = vmatpush1.msra.mxu0 0.0
  %148 = vmatprep.subr.mxu0 0.0
  %149 = vmatpush1.msra.mxu0 0.0
  %150 = vmatprep.subr.mxu0 0.0
  %151 = vmatpush1.msra.mxu0 0.0
  %152 = vmatprep.subr.mxu0 0.0
  %153 = vmatpush1.msra.mxu0 0.0
  %154 = vmatprep.subr.mxu0 0.0
  %155 = vmatpush1.msra.mxu0 0.0
  %156 = vmatprep.subr.mxu0 0.0
  %157 = vmatpush1.msra.mxu0 0.0
  %158 = vmatprep.subr.mxu0 0.0
  %159 = vmatpush1.msra.mxu0 0.0
  %160 = vmatprep.subr.mxu0 0.0
  %161 = vmatpush1.msra.mxu0 0.0
  %162 = vmatprep.subr.mxu0 0.0
  %163 = vmatpush1.msra.mxu0 0.0
  %164 = vmatprep.subr.mxu0 0.0
  %165 = vmatpush1.msra.mxu0 0.0
  %166 = vmatprep.subr.mxu0 0.0
  %167 = vmatpush1.msra.mxu0 0.0
  %168 = vmatprep.subr.mxu0 0.0
  %169 = vmatpush1.msra.mxu0 0.0
  %170 = vmatprep.subr.mxu0 0.0
  %171 = vmatpush1.msra.mxu0 0.0
  %172 = vmatprep.subr.mxu0 0.0
  %173 = vmatpush1.msra.mxu0 0.0
  %174 = vmatprep.subr.mxu0 0.0
  %175 = vmatpush1.msra.mxu0 0.0
  %176 = vmatprep.mubr.f32.mxu0 0.0
  %177 = vmatmul.mubr.f32.gmra.mrb[0].mxu0 %v111
  %v178 = vpop.f32.mrb[0].mxu0
  %v179 = vadd.f32 0.0, %v178
  %v180 = vpop.f32.mrb[0].mxu0
  %181 = vdwg.mxu0
  %182 = vset.pattern.permute.xlu0 2
  %183 = vperm.xlu0 %182, %v13
  %v184 = vpop.permute.xlu0 %183
  %vm185 = vcmp.eq.s32.totalorder %v184, %v12
  %v186 = vsel %vm185, 1, 0
  %v187 = vcvt.s32.f32 %v186
  %188 = vmatprep.subr.mxu0 0.0
  %189 = vmatpush1.msra.mxu0 %v20
  %190 = vmatprep.subr.mxu0 0.0
  %191 = vmatpush1.msra.mxu0 %v21
  %192 = vmatprep.subr.mxu0 0.0
  %193 = vmatpush1.msra.mxu0 %v22
  %194 = vmatprep.subr.mxu0 0.0
  %195 = vmatpush1.msra.mxu0 %v23
  %196 = vmatprep.subr.mxu0 0.0
  %197 = vmatpush1.msra.mxu0 %v24
  %198 = vmatprep.subr.mxu0 0.0
  %199 = vmatpush1.msra.mxu0 %v25
  %200 = vmatprep.subr.mxu0 0.0
  %201 = vmatpush1.msra.mxu0 %v26
  %202 = vmatprep.subr.mxu0 0.0
  %203 = vmatpush1.msra.mxu0 %v27
  %204 = vmatprep.subr.mxu0 0.0
  %205 = vmatpush1.msra.mxu0 %v28
  %206 = vmatprep.subr.mxu0 0.0
  %207 = vmatpush1.msra.mxu0 %v29
  %208 = vmatprep.subr.mxu0 0.0
  %209 = vmatpush1.msra.mxu0 %v30
  %210 = vmatprep.subr.mxu0 0.0
  %211 = vmatpush1.msra.mxu0 %v31
  %212 = vmatprep.subr.mxu0 0.0
  %213 = vmatpush1.msra.mxu0 %v32
  %214 = vmatprep.subr.mxu0 0.0
  %215 = vmatpush1.msra.mxu0 %v33
  %216 = vmatprep.subr.mxu0 0.0
  %217 = vmatpush1.msra.mxu0 %v34
  %218 = vmatprep.subr.mxu0 0.0
  %219 = vmatpush1.msra.mxu0 %v35
  %220 = vmatprep.subr.mxu0 0.0
  %221 = vmatpush1.msra.mxu0 0.0
  %222 = vmatprep.subr.mxu0 0.0
  %223 = vmatpush1.msra.mxu0 0.0
  %224 = vmatprep.subr.mxu0 0.0
  %225 = vmatpush1.msra.mxu0 0.0
  %226 = vmatprep.subr.mxu0 0.0
  %227 = vmatpush1.msra.mxu0 0.0
  %228 = vmatprep.subr.mxu0 0.0
  %229 = vmatpush1.msra.mxu0 0.0
  %230 = vmatprep.subr.mxu0 0.0
  %231 = vmatpush1.msra.mxu0 0.0
  %232 = vmatprep.subr.mxu0 0.0
  %233 = vmatpush1.msra.mxu0 0.0
  %234 = vmatprep.subr.mxu0 0.0
  %235 = vmatpush1.msra.mxu0 0.0
  %236 = vmatprep.subr.mxu0 0.0
  %237 = vmatpush1.msra.mxu0 0.0
  %238 = vmatprep.subr.mxu0 0.0
  %239 = vmatpush1.msra.mxu0 0.0
  %240 = vmatprep.subr.mxu0 0.0
  %241 = vmatpush1.msra.mxu0 0.0
  %242 = vmatprep.subr.mxu0 0.0
  %243 = vmatpush1.msra.mxu0 0.0
  %244 = vmatprep.subr.mxu0 0.0
  %245 = vmatpush1.msra.mxu0 0.0
  %246 = vmatprep.subr.mxu0 0.0
  %247 = vmatpush1.msra.mxu0 0.0
  %248 = vmatprep.subr.mxu0 0.0
  %249 = vmatpush1.msra.mxu0 0.0
  %250 = vmatprep.subr.mxu0 0.0
  %251 = vmatpush1.msra.mxu0 0.0
  %252 = vmatprep.mubr.f32.mxu0 0.0
  %253 = vmatmul.mubr.f32.gmra.mrb[0].mxu0 %v187
  %v254 = vpop.f32.mrb[0].mxu0
  %v255 = vadd.f32 0.0, %v254
  %v256 = vpop.f32.mrb[0].mxu0
  %257 = vdwg.mxu0
  %258 = vset.pattern.permute.xlu0 3
  %259 = vperm.xlu0 %258, %v13
  %v260 = vpop.permute.xlu0 %259
  %vm261 = vcmp.eq.s32.totalorder %v260, %v12
  %v262 = vsel %vm261, 1, 0
  %v263 = vcvt.s32.f32 %v262
  %264 = vmatprep.subr.mxu0 0.0
  %265 = vmatpush1.msra.mxu0 %v20
  %266 = vmatprep.subr.mxu0 0.0
  %267 = vmatpush1.msra.mxu0 %v21
  %268 = vmatprep.subr.mxu0 0.0
  %269 = vmatpush1.msra.mxu0 %v22
  %270 = vmatprep.subr.mxu0 0.0
  %271 = vmatpush1.msra.mxu0 %v23
  %272 = vmatprep.subr.mxu0 0.0
  %273 = vmatpush1.msra.mxu0 %v24
  %274 = vmatprep.subr.mxu0 0.0
  %275 = vmatpush1.msra.mxu0 %v25
  %276 = vmatprep.subr.mxu0 0.0
  %277 = vmatpush1.msra.mxu0 %v26
  %278 = vmatprep.subr.mxu0 0.0
  %279 = vmatpush1.msra.mxu0 %v27
  %280 = vmatprep.subr.mxu0 0.0
  %281 = vmatpush1.msra.mxu0 %v28
  %282 = vmatprep.subr.mxu0 0.0
  %283 = vmatpush1.msra.mxu0 %v29
  %284 = vmatprep.subr.mxu0 0.0
  %285 = vmatpush1.msra.mxu0 %v30
  %286 = vmatprep.subr.mxu0 0.0
  %287 = vmatpush1.msra.mxu0 %v31
  %288 = vmatprep.subr.mxu0 0.0
  %289 = vmatpush1.msra.mxu0 %v32
  %290 = vmatprep.subr.mxu0 0.0
  %291 = vmatpush1.msra.mxu0 %v33
  %292 = vmatprep.subr.mxu0 0.0
  %293 = vmatpush1.msra.mxu0 %v34
  %294 = vmatprep.subr.mxu0 0.0
  %295 = vmatpush1.msra.mxu0 %v35
  %296 = vmatprep.subr.mxu0 0.0
  %297 = vmatpush1.msra.mxu0 0.0
  %298 = vmatprep.subr.mxu0 0.0
  %299 = vmatpush1.msra.mxu0 0.0
  %300 = vmatprep.subr.mxu0 0.0
  %301 = vmatpush1.msra.mxu0 0.0
  %302 = vmatprep.subr.mxu0 0.0
  %303 = vmatpush1.msra.mxu0 0.0
  %304 = vmatprep.subr.mxu0 0.0
  %305 = vmatpush1.msra.mxu0 0.0
  %306 = vmatprep.subr.mxu0 0.0
  %307 = vmatpush1.msra.mxu0 0.0
  %308 = vmatprep.subr.mxu0 0.0
  %309 = vmatpush1.msra.mxu0 0.0
  %310 = vmatprep.subr.mxu0 0.0
  %311 = vmatpush1.msra.mxu0 0.0
  %312 = vmatprep.subr.mxu0 0.0
  %313 = vmatpush1.msra.mxu0 0.0
  %314 = vmatprep.subr.mxu0 0.0
  %315 = vmatpush1.msra.mxu0 0.0
  %316 = vmatprep.subr.mxu0 0.0
  %317 = vmatpush1.msra.mxu0 0.0
  %318 = vmatprep.subr.mxu0 0.0
  %319 = vmatpush1.msra.mxu0 0.0
  %320 = vmatprep.subr.mxu0 0.0
  %321 = vmatpush1.msra.mxu0 0.0
  %322 = vmatprep.subr.mxu0 0.0
  %323 = vmatpush1.msra.mxu0 0.0
  %324 = vmatprep.subr.mxu0 0.0
  %325 = vmatpush1.msra.mxu0 0.0
  %326 = vmatprep.subr.mxu0 0.0
  %327 = vmatpush1.msra.mxu0 0.0
  %328 = vmatprep.mubr.f32.mxu0 0.0
  %329 = vmatmul.mubr.f32.gmra.mrb[0].mxu0 %v263
  %v330 = vpop.f32.mrb[0].mxu0
  %v331 = vadd.f32 0.0, %v330
  %v332 = vpop.f32.mrb[0].mxu0
  %333 = vdwg.mxu0
  %335 = vrot.lane.b32.xlu0 %v179, 32
  %v336 = vpop.permute.xlu0 %335
  %339 = vrot.lane.b32.xlu0 %v255, 64
  %v340 = vpop.permute.xlu0 %339
  %343 = vrot.lane.b32.xlu0 %v331, 96
  %v344 = vpop.permute.xlu0 %343
  %vm346 = vcmask 261120
  %v347 = vsel %vm346, %v103, %v336
  %vm348 = vcmask 523264
  %v349 = vsel %vm348, %v347, %v340
  %vm350 = vcmask 785408
  %v351 = vsel %vm350, %v349, %v344
  %352 = vst [vmem:[%s2] sm:$0xff] %v351
  // Predicated region
  $region10: #{embedder_forward.1} parent=0 // pred_check
    _
  $region11: #{embedder_forward.1} parent=0 // pred_check_branch
    %354 = sbr.rel (0) target = $region13
  $region12: #{embedder_forward.1} parent=0 // pred_region
    _
  $region13: #{embedder_forward.1} parent=0 // pred_fallthru
    _
  // Predicated region
  $region14: #{embedder_forward.1} parent=0 // pred_check
    _
  $region15: #{embedder_forward.1} parent=0 // pred_check_branch
    %356 = sbr.rel (0) target = $region17
  $region16: #{embedder_forward.1} parent=0 // pred_region
    _
  $region17: #{embedder_forward.1} parent=0 // pred_fallthru
    _

</llo_original>
